<compile_context>
chip_gen: v5e
topology: v5e:2x2
jax: 0.10.0
libtpu: 0.0.40
codegen_flags: <defaults>
</compile_context>

<pallas_src>
import functools

import jax
import jax.numpy as jnp
from jax.experimental import pallas as pl
from jax.experimental.pallas import tpu as pltpu


def _round_up(x, m):
    return ((x + m - 1) // m) * m


def _cdiv(a, b):
    return -(-a // b)


def adaptive_fusion_kernel(feats_ref, w1_ref, b1_ref, w2_ref, b2_ref, mw_ref,
                           fused_ref, weights_ref, *, n_mod):
    """One batch tile.

    feats_ref:   (n_mod, TB, Dp) f32   -- pipelined HBM<->VMEM per grid step
    w1_ref:      (n_mod, Dp, Hp) bf16  -- VMEM-resident (single buffered)
    b1_ref:      (n_mod, 1, Hp)  f32
    w2_ref:      (n_mod, 1, Hp)  f32
    b2_ref:      (1, 128)        f32   -- second-linear bias, lane-packed
    mw_ref:      (1, 128)        f32   -- modality_weights, lane-packed
    fused_ref:   (TB, Dp)        f32
    weights_ref: (TB, n_mod)     f32
    """
    tb = fused_ref.shape[0]
    lw = mw_ref.shape[-1]

    lane = jax.lax.broadcasted_iota(jnp.int32, (tb, lw), 1)
    scores = jnp.full((tb, lw), -1e30, dtype=jnp.float32)

    # --- per-modality importance score: Linear(D->H) -> ReLU -> Linear(H->1) ---
    for i in range(n_mod):
        x_bf16 = feats_ref[i].astype(jnp.bfloat16)               # MXU-native dtype
        h = jnp.dot(x_bf16, w1_ref[i],
                    preferred_element_type=jnp.float32)          # (TB, Hp), f32 acc
        h = jnp.maximum(h + b1_ref[i], 0.0)                      # ReLU (f32 VPU)
        s = jnp.sum(h * w2_ref[i], axis=1, keepdims=True)        # (TB, 1) lane reduce
        scores = jnp.where(lane == i, s, scores)                 # pack into lane i

    scores = scores + b2_ref[...]       # bias lanes >= n_mod are 0 -> filler stays -1e30

    # --- softmax over modality lanes, scaled by modality_weights, renormalized.
    # exact identity: softmax_i*mw_i / sum_j softmax_j*mw_j
    #              == exp(s_i-m)*mw_i / sum_j exp(s_j-m)*mw_j
    m = jnp.max(scores, axis=1, keepdims=True)                   # (TB, 1)
    e = jnp.exp(scores - m) * mw_ref[...]                        # filler lanes -> 0
    total = jnp.sum(e, axis=1, keepdims=True)                    # (TB, 1)
    inv = pl.reciprocal(total, approx=True)                      # EUP slot
    inv = inv * (2.0 - total * inv)                              # 1 Newton step
    w = e * inv                                                  # (TB, 128)

    # --- narrow importance-weights writeback: only the n_mod real lanes ---
    weights_ref[...] = w[:, :n_mod]

    # --- weighted fusion (f32), accumulator seeded with the first term ---
    fused = w[:, 0:1] * feats_ref[0]
    for i in range(1, n_mod):
        fused = fused + w[:, i:i + 1] * feats_ref[i]
    fused_ref[...] = fused


def _vmem_capacity_bytes():
    try:
        return int(pltpu.get_tpu_info().vmem_capacity_bytes)
    except Exception:
        return 64 * 1024 * 1024           # conservative fallback (v7x per-TC size)


def _auto_tile_b(B, Dp, Hp, n_mod, vmem_bytes, block_b_cap):
    """Pick the batch tile so the VMEM working set fits this TPU generation."""
    # Single-buffered residents: bf16 W1 + f32 b1/w2 + lane-packed b2/mw.
    resident = n_mod * Dp * Hp * 2 + 2 * n_mod * Hp * 4 + 2 * 128 * 4
    budget = int(vmem_bytes * 0.55) - resident - (2 << 20)       # pipeline slack
    budget = max(budget, 2 << 20)
    per_row = (2 * n_mod * Dp * 4        # feats block, double-buffered
               + 2 * Dp * 4              # fused output block, double-buffered
               + 2 * 128 * 4             # weights output block (lane padded in VMEM)
               + n_mod * Dp * 2          # bf16 matmul operand temps
               + Hp * 4 + Dp * 4         # hidden activations + fused accumulator
               + 4 * 128 * 4)            # lane-packed score/softmax temps
    tb = (budget // per_row) // 16 * 16
    # >= 4 evenly sized tiles (when B allows) so v7x's two TensorCores both work.
    tb_balanced = max(16, _round_up(_cdiv(B, 4), 16))
    return int(max(16, min(tb, tb_balanced, block_b_cap)))


def adaptive_fusion(feats, w1, b1, w2_row, b2, modality_weights, *, block_b=1024):
    """feats: (n_mod, B, D) stacked modality features.

    Returns (fused (B, D) f32, importance_weights (B, n_mod) f32).
    """
    n_mod, B, D = feats.shape
    H = w1.shape[-1]
    f32, bf16 = jnp.float32, jnp.bfloat16
    LW = 128

    Dp = _round_up(D, 128)
    Hp = _round_up(H, 128)

    vmem_bytes = _vmem_capacity_bytes()
    vmem_limit = min(int(vmem_bytes * 3 // 4), 112 * 1024 * 1024)

    TB = _auto_tile_b(B, Dp, Hp, n_mod, vmem_bytes, block_b)
    Bp = _round_up(B, TB)
    # TODO(synk): handle the ragged last batch tile in-kernel (masked store)
    # instead of zero-padding B up to a multiple of TB when B % TB != 0.

    # Skip the padded feats copy (and the output slice) when already aligned.
    if Bp == B and Dp == D and feats.dtype == f32:
        feats_p = feats
    else:
        feats_p = jnp.zeros((n_mod, Bp, Dp), f32).at[:, :B, :D].set(feats.astype(f32))

    w1_p = jnp.zeros((n_mod, Dp, Hp), bf16).at[:, :D, :H].set(w1.astype(bf16))
    b1_p = jnp.zeros((n_mod, 1, Hp), f32).at[:, :, :H].set(b1.astype(f32))
    w2_p = jnp.zeros((n_mod, 1, Hp), f32).at[:, :, :H].set(w2_row.astype(f32))
    b2_lane = jnp.zeros((1, LW), f32).at[0, :n_mod].set(b2.astype(f32))
    mw_lane = jnp.zeros((1, LW), f32).at[0, :n_mod].set(modality_weights.astype(f32))

    kernel = functools.partial(adaptive_fusion_kernel, n_mod=n_mod)
    resident = pl.BlockSpec(memory_space=pltpu.MemorySpace.VMEM)  # single-buffered

    fused_p, weights_p = pl.pallas_call(
        kernel,
        out_shape=(jax.ShapeDtypeStruct((Bp, Dp), f32),
                   jax.ShapeDtypeStruct((Bp, n_mod), f32)),
        grid=(Bp // TB,),
        in_specs=[
            # feats: pipelined batch tiles (double-buffered by default).
            # TODO(synk): on v6e (128 MiB VMEM) a deeper feats pipeline
            # (pipeline_mode=pl.Buffered(3)) could be requested for small-D shapes.
            pl.BlockSpec((n_mod, TB, Dp), lambda i: (0, i, 0)),
            resident,   # W1 (bf16)
            resident,   # b1
            resident,   # w2 rows
            resident,   # b2, lane-packed
            resident,   # modality_weights, lane-packed
        ],
        out_specs=(pl.BlockSpec((TB, Dp), lambda i: (i, 0)),
                   pl.BlockSpec((TB, n_mod), lambda i: (i, 0))),
        compiler_params=pltpu.CompilerParams(
            dimension_semantics=("parallel",),   # shard batch tiles over TCs (v7x)
            vmem_limit_bytes=vmem_limit),
    )(feats_p, w1_p, b1_p, w2_p, b2_lane, mw_lane)

    fused = fused_p if (Bp == B and Dp == D) else fused_p[:B, :D]
    weights = weights_p if Bp == B else weights_p[:B]
    return fused, weights


def reference(feats, w1, b1, w2_row, b2, modality_weights, score_dtype=jnp.float32):
    """Pure-JAX reference mirroring the PyTorch forward.

    score_dtype=bfloat16 mirrors the kernel's MXU precision for tight checks.
    """
    n_mod, B, D = feats.shape
    scores = []
    for i in range(n_mod):
        h = jnp.dot(feats[i].astype(score_dtype), w1[i].astype(score_dtype),
                    preferred_element_type=jnp.float32)
        h = jnp.maximum(h + b1[i], 0.0)
        s = jnp.sum(h * w2_row[i], axis=1, keepdims=True) + b2[i]
        scores.append(s)
    scores = jnp.concatenate(scores, axis=1)                    # (B, n_mod)
    w = jax.nn.softmax(scores, axis=1) * modality_weights[None, :]
    w = w / jnp.sum(w, axis=1, keepdims=True)
    fused = jnp.zeros((B, D), jnp.float32)
    for i in range(n_mod):
        fused = fused + w[:, i:i + 1] * feats[i]
    return fused, w


def _make_inputs(key, n_mod, B, D):
    H = max(D // 2, 1)
    k_feat, k_w1, k_b1, k_w2, k_b2 = jax.random.split(key, 5)
    feats = jax.random.normal(k_feat, (n_mod, B, D), jnp.float32)
    lim1 = 1.0 / jnp.sqrt(D)
    lim2 = 1.0 / jnp.sqrt(H)
    w1 = jax.random.uniform(k_w1, (n_mod, D, H), jnp.float32, -lim1, lim1)
    b1 = jax.random.uniform(k_b1, (n_mod, 1, H), jnp.float32, -lim1, lim1)
    w2 = jax.random.uniform(k_w2, (n_mod, 1, H), jnp.float32, -lim2, lim2)
    b2 = jax.random.uniform(k_b2, (n_mod,), jnp.float32, -lim2, lim2)
    mw = jnp.ones((n_mod,), jnp.float32) / n_mod               # registered buffer
    return feats, w1, b1, w2, b2, mw


def _run_case(key, n_mod, B, D):
    feats, w1, b1, w2, b2, mw = _make_inputs(key, n_mod, B, D)
    fused, weights = adaptive_fusion(feats, w1, b1, w2, b2, mw)
    jax.block_until_ready((fused, weights))
    assert fused.shape == (B, D) and weights.shape == (B, n_mod)

    # Tight check vs a reference that matches the kernel's bf16 score matmul.
    fused_bf, w_bf = reference(feats, w1, b1, w2, b2, mw, score_dtype=jnp.bfloat16)
    assert jnp.allclose(fused, fused_bf, atol=5e-3, rtol=5e-3)
    assert jnp.allclose(weights, w_bf, atol=5e-3, rtol=5e-3)

    # Loose sanity check vs the full-f32 PyTorch-equivalent reference.
    fused_f, w_f = reference(feats, w1, b1, w2, b2, mw)
    assert jnp.allclose(fused, fused_f, atol=5e-2, rtol=5e-2)
    assert jnp.allclose(weights, w_f, atol=5e-2, rtol=5e-2)
    assert jnp.allclose(jnp.sum(weights, axis=1), 1.0, atol=1e-5)


if __name__ == "__main__":
    # Small shape consistent with the module: 3 modalities, d_model=32, batch=4.
    _run_case(jax.random.PRNGKey(0), n_mod=3, B=4, D=32)
    # Larger batch: multi-tile grid (4 balanced tiles) + batch/lane padding path.
    _run_case(jax.random.PRNGKey(1), n_mod=3, B=528, D=32)
    # Aligned shapes: exercises the "no padded copy / no output slice" fast path.
    _run_case(jax.random.PRNGKey(2), n_mod=3, B=256, D=128)
    print("KERNEL_OK")
</pallas_src>

<mosaic_0001>
module attributes {stable_mosaic.version = 11 : i64} {
  func.func @adaptive_fusion_kernel(%arg0: i32, %arg1: memref<3x16x128xf32, #tpu.memory_space<vmem>>, %arg2: memref<3x128x128xbf16, #tpu.memory_space<vmem>>, %arg3: memref<3x1x128xf32, #tpu.memory_space<vmem>>, %arg4: memref<3x1x128xf32, #tpu.memory_space<vmem>>, %arg5: memref<1x128xf32, #tpu.memory_space<vmem>>, %arg6: memref<1x128xf32, #tpu.memory_space<vmem>>, %arg7: memref<16x128xf32, #tpu.memory_space<vmem>>, %arg8: memref<16x3xf32, #tpu.memory_space<vmem>>) attributes {dimension_semantics = [#tpu.dimension_semantics<parallel>], iteration_bounds = array<i64: 1>, scalar_prefetch = 0 : i64, scratch_operands = 0 : i64, tpu.core_type = #tpu.core_type<tc>, window_params = [{transform_indices = @transform_0, window_bounds = array<i64: 3, 16, 128>}, {pipeline_mode = #tpu.pipeline_mode<synchronous>, transform_indices = @transform_1, window_bounds = array<i64: 3, 128, 128>}, {pipeline_mode = #tpu.pipeline_mode<synchronous>, transform_indices = @transform_2, window_bounds = array<i64: 3, 1, 128>}, {pipeline_mode = #tpu.pipeline_mode<synchronous>, transform_indices = @transform_3, window_bounds = array<i64: 3, 1, 128>}, {pipeline_mode = #tpu.pipeline_mode<synchronous>, transform_indices = @transform_4, window_bounds = array<i64: 1, 128>}, {pipeline_mode = #tpu.pipeline_mode<synchronous>, transform_indices = @transform_5, window_bounds = array<i64: 1, 128>}, {transform_indices = @transform_6, window_bounds = array<i64: 16, 128>}, {transform_indices = @transform_7, window_bounds = array<i64: 16, 3>}]} {
    %0 = tpu.iota {dimensions = array<i32: 1>} : vector<16x128xi32>
    %cst = arith.constant -1.000000e+30 : f32
    %1 = vector.broadcast %cst : f32 to vector<16x128xf32>
    %c0 = arith.constant 0 : index
    %c0_0 = arith.constant 0 : index
    %c0_1 = arith.constant 0 : index
    %2 = vector.load %arg1[%c0, %c0_0, %c0_1] : memref<3x16x128xf32, #tpu.memory_space<vmem>>, vector<1x16x128xf32>
    %3 = vector.shape_cast %2 : vector<1x16x128xf32> to vector<16x128xf32>
    %4 = arith.truncf %3 : vector<16x128xf32> to vector<16x128xbf16>
    %c0_2 = arith.constant 0 : index
    %c0_3 = arith.constant 0 : index
    %c0_4 = arith.constant 0 : index
    %5 = vector.load %arg2[%c0_2, %c0_3, %c0_4] : memref<3x128x128xbf16, #tpu.memory_space<vmem>>, vector<1x128x128xbf16>
    %6 = vector.shape_cast %5 : vector<1x128x128xbf16> to vector<128x128xbf16>
    %cst_5 = arith.constant dense<0.000000e+00> : vector<16x128xf32>
    %7 = tpu.matmul %4, %6, %cst_5 {dimension_numbers = #tpu.dot_dimension_numbers<[1], [0], [0], [1], [0, 0, 1, 1], [], []>} : vector<16x128xbf16>, vector<128x128xbf16>, vector<16x128xf32> -> vector<16x128xf32>
    %c0_6 = arith.constant 0 : index
    %c0_7 = arith.constant 0 : index
    %c0_8 = arith.constant 0 : index
    %8 = vector.load %arg3[%c0_6, %c0_7, %c0_8] : memref<3x1x128xf32, #tpu.memory_space<vmem>>, vector<1x1x128xf32>
    %9 = vector.shape_cast %8 : vector<1x1x128xf32> to vector<1x128xf32>
    %10 = vector.broadcast %9 : vector<1x128xf32> to vector<16x128xf32>
    %11 = arith.addf %7, %10 : vector<16x128xf32>
    %cst_9 = arith.constant 0.000000e+00 : f32
    %12 = vector.broadcast %cst_9 : f32 to vector<16x128xf32>
    %13 = arith.maximumf %11, %12 : vector<16x128xf32>
    %c0_10 = arith.constant 0 : index
    %c0_11 = arith.constant 0 : index
    %c0_12 = arith.constant 0 : index
    %14 = vector.load %arg4[%c0_10, %c0_11, %c0_12] : memref<3x1x128xf32, #tpu.memory_space<vmem>>, vector<1x1x128xf32>
    %15 = vector.shape_cast %14 : vector<1x1x128xf32> to vector<1x128xf32>
    %16 = vector.broadcast %15 : vector<1x128xf32> to vector<16x128xf32>
    %17 = arith.mulf %13, %16 : vector<16x128xf32>
    %cst_13 = arith.constant dense<0.000000e+00> : vector<16xf32>
    %18 = vector.multi_reduction <add>, %17, %cst_13 [1] : vector<16x128xf32> to vector<16xf32>
    %19 = vector.shape_cast %18 : vector<16xf32> to vector<16x1xf32>
    %c0_i32 = arith.constant 0 : i32
    %20 = vector.broadcast %c0_i32 : i32 to vector<16x128xi32>
    %21 = arith.cmpi eq, %0, %20 : vector<16x128xi32>
    %22 = vector.shape_cast %19 : vector<16x1xf32> to vector<16x1xf32>
    %23 = vector.broadcast %22 : vector<16x1xf32> to vector<16x128xf32>
    %24 = arith.select %21, %23, %1 : vector<16x128xi1>, vector<16x128xf32>
    %c1 = arith.constant 1 : index
    %c0_14 = arith.constant 0 : index
    %c0_15 = arith.constant 0 : index
    %25 = vector.load %arg1[%c1, %c0_14, %c0_15] : memref<3x16x128xf32, #tpu.memory_space<vmem>>, vector<1x16x128xf32>
    %26 = vector.shape_cast %25 : vector<1x16x128xf32> to vector<16x128xf32>
    %27 = arith.truncf %26 : vector<16x128xf32> to vector<16x128xbf16>
    %c1_16 = arith.constant 1 : index
    %c0_17 = arith.constant 0 : index
    %c0_18 = arith.constant 0 : index
    %28 = vector.load %arg2[%c1_16, %c0_17, %c0_18] : memref<3x128x128xbf16, #tpu.memory_space<vmem>>, vector<1x128x128xbf16>
    %29 = vector.shape_cast %28 : vector<1x128x128xbf16> to vector<128x128xbf16>
    %cst_19 = arith.constant dense<0.000000e+00> : vector<16x128xf32>
    %30 = tpu.matmul %27, %29, %cst_19 {dimension_numbers = #tpu.dot_dimension_numbers<[1], [0], [0], [1], [0, 0, 1, 1], [], []>} : vector<16x128xbf16>, vector<128x128xbf16>, vector<16x128xf32> -> vector<16x128xf32>
    %c1_20 = arith.constant 1 : index
    %c0_21 = arith.constant 0 : index
    %c0_22 = arith.constant 0 : index
    %31 = vector.load %arg3[%c1_20, %c0_21, %c0_22] : memref<3x1x128xf32, #tpu.memory_space<vmem>>, vector<1x1x128xf32>
    %32 = vector.shape_cast %31 : vector<1x1x128xf32> to vector<1x128xf32>
    %33 = vector.broadcast %32 : vector<1x128xf32> to vector<16x128xf32>
    %34 = arith.addf %30, %33 : vector<16x128xf32>
    %cst_23 = arith.constant 0.000000e+00 : f32
    %35 = vector.broadcast %cst_23 : f32 to vector<16x128xf32>
    %36 = arith.maximumf %34, %35 : vector<16x128xf32>
    %c1_24 = arith.constant 1 : index
    %c0_25 = arith.constant 0 : index
    %c0_26 = arith.constant 0 : index
    %37 = vector.load %arg4[%c1_24, %c0_25, %c0_26] : memref<3x1x128xf32, #tpu.memory_space<vmem>>, vector<1x1x128xf32>
    %38 = vector.shape_cast %37 : vector<1x1x128xf32> to vector<1x128xf32>
    %39 = vector.broadcast %38 : vector<1x128xf32> to vector<16x128xf32>
    %40 = arith.mulf %36, %39 : vector<16x128xf32>
    %cst_27 = arith.constant dense<0.000000e+00> : vector<16xf32>
    %41 = vector.multi_reduction <add>, %40, %cst_27 [1] : vector<16x128xf32> to vector<16xf32>
    %42 = vector.shape_cast %41 : vector<16xf32> to vector<16x1xf32>
    %c1_i32 = arith.constant 1 : i32
    %43 = vector.broadcast %c1_i32 : i32 to vector<16x128xi32>
    %44 = arith.cmpi eq, %0, %43 : vector<16x128xi32>
    %45 = vector.shape_cast %42 : vector<16x1xf32> to vector<16x1xf32>
    %46 = vector.broadcast %45 : vector<16x1xf32> to vector<16x128xf32>
    %47 = arith.select %44, %46, %24 : vector<16x128xi1>, vector<16x128xf32>
    %c2 = arith.constant 2 : index
    %c0_28 = arith.constant 0 : index
    %c0_29 = arith.constant 0 : index
    %48 = vector.load %arg1[%c2, %c0_28, %c0_29] : memref<3x16x128xf32, #tpu.memory_space<vmem>>, vector<1x16x128xf32>
    %49 = vector.shape_cast %48 : vector<1x16x128xf32> to vector<16x128xf32>
    %50 = arith.truncf %49 : vector<16x128xf32> to vector<16x128xbf16>
    %c2_30 = arith.constant 2 : index
    %c0_31 = arith.constant 0 : index
    %c0_32 = arith.constant 0 : index
    %51 = vector.load %arg2[%c2_30, %c0_31, %c0_32] : memref<3x128x128xbf16, #tpu.memory_space<vmem>>, vector<1x128x128xbf16>
    %52 = vector.shape_cast %51 : vector<1x128x128xbf16> to vector<128x128xbf16>
    %cst_33 = arith.constant dense<0.000000e+00> : vector<16x128xf32>
    %53 = tpu.matmul %50, %52, %cst_33 {dimension_numbers = #tpu.dot_dimension_numbers<[1], [0], [0], [1], [0, 0, 1, 1], [], []>} : vector<16x128xbf16>, vector<128x128xbf16>, vector<16x128xf32> -> vector<16x128xf32>
    %c2_34 = arith.constant 2 : index
    %c0_35 = arith.constant 0 : index
    %c0_36 = arith.constant 0 : index
    %54 = vector.load %arg3[%c2_34, %c0_35, %c0_36] : memref<3x1x128xf32, #tpu.memory_space<vmem>>, vector<1x1x128xf32>
    %55 = vector.shape_cast %54 : vector<1x1x128xf32> to vector<1x128xf32>
    %56 = vector.broadcast %55 : vector<1x128xf32> to vector<16x128xf32>
    %57 = arith.addf %53, %56 : vector<16x128xf32>
    %cst_37 = arith.constant 0.000000e+00 : f32
    %58 = vector.broadcast %cst_37 : f32 to vector<16x128xf32>
    %59 = arith.maximumf %57, %58 : vector<16x128xf32>
    %c2_38 = arith.constant 2 : index
    %c0_39 = arith.constant 0 : index
    %c0_40 = arith.constant 0 : index
    %60 = vector.load %arg4[%c2_38, %c0_39, %c0_40] : memref<3x1x128xf32, #tpu.memory_space<vmem>>, vector<1x1x128xf32>
    %61 = vector.shape_cast %60 : vector<1x1x128xf32> to vector<1x128xf32>
    %62 = vector.broadcast %61 : vector<1x128xf32> to vector<16x128xf32>
    %63 = arith.mulf %59, %62 : vector<16x128xf32>
    %cst_41 = arith.constant dense<0.000000e+00> : vector<16xf32>
    %64 = vector.multi_reduction <add>, %63, %cst_41 [1] : vector<16x128xf32> to vector<16xf32>
    %65 = vector.shape_cast %64 : vector<16xf32> to vector<16x1xf32>
    %c2_i32 = arith.constant 2 : i32
    %66 = vector.broadcast %c2_i32 : i32 to vector<16x128xi32>
    %67 = arith.cmpi eq, %0, %66 : vector<16x128xi32>
    %68 = vector.shape_cast %65 : vector<16x1xf32> to vector<16x1xf32>
    %69 = vector.broadcast %68 : vector<16x1xf32> to vector<16x128xf32>
    %70 = arith.select %67, %69, %47 : vector<16x128xi1>, vector<16x128xf32>
    %c0_42 = arith.constant 0 : index
    %c0_43 = arith.constant 0 : index
    %71 = vector.load %arg5[%c0_42, %c0_43] : memref<1x128xf32, #tpu.memory_space<vmem>>, vector<1x128xf32>
    %72 = vector.broadcast %71 : vector<1x128xf32> to vector<16x128xf32>
    %73 = arith.addf %70, %72 : vector<16x128xf32>
    %cst_44 = arith.constant dense<0xFF800000> : vector<16xf32>
    %74 = vector.multi_reduction <maximumf>, %73, %cst_44 [1] : vector<16x128xf32> to vector<16xf32>
    %75 = vector.shape_cast %74 : vector<16xf32> to vector<16x1xf32>
    %76 = vector.broadcast %75 : vector<16x1xf32> to vector<16x128xf32>
    %77 = arith.subf %73, %76 : vector<16x128xf32>
    %78 = math.exp %77 : vector<16x128xf32>
    %c0_45 = arith.constant 0 : index
    %c0_46 = arith.constant 0 : index
    %79 = vector.load %arg6[%c0_45, %c0_46] : memref<1x128xf32, #tpu.memory_space<vmem>>, vector<1x128xf32>
    %80 = vector.broadcast %79 : vector<1x128xf32> to vector<16x128xf32>
    %81 = arith.mulf %78, %80 : vector<16x128xf32>
    %cst_47 = arith.constant dense<0.000000e+00> : vector<16xf32>
    %82 = vector.multi_reduction <add>, %81, %cst_47 [1] : vector<16x128xf32> to vector<16xf32>
    %83 = vector.shape_cast %82 : vector<16xf32> to vector<16x1xf32>
    %84 = tpu.reciprocal %83 {approx = true} : vector<16x1xf32> -> vector<16x1xf32>
    %85 = arith.mulf %83, %84 : vector<16x1xf32>
    %cst_48 = arith.constant 2.000000e+00 : f32
    %86 = vector.broadcast %cst_48 : f32 to vector<16x1xf32>
    %87 = arith.subf %86, %85 : vector<16x1xf32>
    %88 = arith.mulf %84, %87 : vector<16x1xf32>
    %89 = vector.broadcast %88 : vector<16x1xf32> to vector<16x128xf32>
    %90 = arith.mulf %81, %89 : vector<16x128xf32>
    %91 = vector.extract_strided_slice %90 {offsets = [0, 0], sizes = [16, 3], strides = [1, 1]} : vector<16x128xf32> to vector<16x3xf32>
    %c0_49 = arith.constant 0 : index
    %c0_50 = arith.constant 0 : index
    %92 = vector.load %arg8[%c0_49, %c0_50] : memref<16x3xf32, #tpu.memory_space<vmem>>, vector<16x3xf32>
    tpu.vector_store %arg8[%c0_49, %c0_50], %91 {strides = array<i32>} : memref<16x3xf32, #tpu.memory_space<vmem>>, vector<16x3xf32>,
    %93 = vector.extract_strided_slice %90 {offsets = [0, 0], sizes = [16, 1], strides = [1, 1]} : vector<16x128xf32> to vector<16x1xf32>
    %c0_51 = arith.constant 0 : index
    %c0_52 = arith.constant 0 : index
    %c0_53 = arith.constant 0 : index
    %94 = vector.load %arg1[%c0_51, %c0_52, %c0_53] : memref<3x16x128xf32, #tpu.memory_space<vmem>>, vector<1x16x128xf32>
    %95 = vector.shape_cast %94 : vector<1x16x128xf32> to vector<16x128xf32>
    %96 = vector.broadcast %93 : vector<16x1xf32> to vector<16x128xf32>
    %97 = arith.mulf %96, %95 : vector<16x128xf32>
    %98 = vector.extract_strided_slice %90 {offsets = [0, 1], sizes = [16, 1], strides = [1, 1]} : vector<16x128xf32> to vector<16x1xf32>
    %c1_54 = arith.constant 1 : index
    %c0_55 = arith.constant 0 : index
    %c0_56 = arith.constant 0 : index
    %99 = vector.load %arg1[%c1_54, %c0_55, %c0_56] : memref<3x16x128xf32, #tpu.memory_space<vmem>>, vector<1x16x128xf32>
    %100 = vector.shape_cast %99 : vector<1x16x128xf32> to vector<16x128xf32>
    %101 = vector.broadcast %98 : vector<16x1xf32> to vector<16x128xf32>
    %102 = arith.mulf %101, %100 : vector<16x128xf32>
    %103 = arith.addf %97, %102 : vector<16x128xf32>
    %104 = vector.extract_strided_slice %90 {offsets = [0, 2], sizes = [16, 1], strides = [1, 1]} : vector<16x128xf32> to vector<16x1xf32>
    %c2_57 = arith.constant 2 : index
    %c0_58 = arith.constant 0 : index
    %c0_59 = arith.constant 0 : index
    %105 = vector.load %arg1[%c2_57, %c0_58, %c0_59] : memref<3x16x128xf32, #tpu.memory_space<vmem>>, vector<1x16x128xf32>
    %106 = vector.shape_cast %105 : vector<1x16x128xf32> to vector<16x128xf32>
    %107 = vector.broadcast %104 : vector<16x1xf32> to vector<16x128xf32>
    %108 = arith.mulf %107, %106 : vector<16x128xf32>
    %109 = arith.addf %103, %108 : vector<16x128xf32>
    %c0_60 = arith.constant 0 : index
    %c0_61 = arith.constant 0 : index
    %110 = vector.load %arg7[%c0_60, %c0_61] : memref<16x128xf32, #tpu.memory_space<vmem>>, vector<16x128xf32>
    tpu.vector_store %arg7[%c0_60, %c0_61], %109 {strides = array<i32>} : memref<16x128xf32, #tpu.memory_space<vmem>>, vector<16x128xf32>,
    return
  }
  func.func @transform_0(%arg0: i32) -> (i32, i32, i32) {
    %c0_i32 = arith.constant 0 : i32
    %c0_i32_0 = arith.constant 0 : i32
    %c0_i32_1 = arith.constant 0 : i32
    return %c0_i32, %arg0, %c0_i32_0 : i32, i32, i32
  }
  func.func @transform_1(%arg0: i32) -> (i32, i32, i32) {
    %c0_i32 = arith.constant 0 : i32
    %c0_i32_0 = arith.constant 0 : i32
    %c0_i32_1 = arith.constant 0 : i32
    %c0_i32_2 = arith.constant 0 : i32
    return %c0_i32, %c0_i32_0, %c0_i32_1 : i32, i32, i32
  }
  func.func @transform_2(%arg0: i32) -> (i32, i32, i32) {
    %c0_i32 = arith.constant 0 : i32
    %c0_i32_0 = arith.constant 0 : i32
    %c0_i32_1 = arith.constant 0 : i32
    %c0_i32_2 = arith.constant 0 : i32
    return %c0_i32, %c0_i32_0, %c0_i32_1 : i32, i32, i32
  }
  func.func @transform_3(%arg0: i32) -> (i32, i32, i32) {
    %c0_i32 = arith.constant 0 : i32
    %c0_i32_0 = arith.constant 0 : i32
    %c0_i32_1 = arith.constant 0 : i32
    %c0_i32_2 = arith.constant 0 : i32
    return %c0_i32, %c0_i32_0, %c0_i32_1 : i32, i32, i32
  }
  func.func @transform_4(%arg0: i32) -> (i32, i32) {
    %c0_i32 = arith.constant 0 : i32
    %c0_i32_0 = arith.constant 0 : i32
    %c0_i32_1 = arith.constant 0 : i32
    return %c0_i32, %c0_i32_0 : i32, i32
  }
  func.func @transform_5(%arg0: i32) -> (i32, i32) {
    %c0_i32 = arith.constant 0 : i32
    %c0_i32_0 = arith.constant 0 : i32
    %c0_i32_1 = arith.constant 0 : i32
    return %c0_i32, %c0_i32_0 : i32, i32
  }
  func.func @transform_6(%arg0: i32) -> (i32, i32) {
    %c0_i32 = arith.constant 0 : i32
    %c0_i32_0 = arith.constant 0 : i32
    return %arg0, %c0_i32 : i32, i32
  }
  func.func @transform_7(%arg0: i32) -> (i32, i32) {
    %c0_i32 = arith.constant 0 : i32
    %c0_i32_0 = arith.constant 0 : i32
    return %arg0, %c0_i32 : i32, i32
  }
}

</mosaic_0001>

<llo_original>
// kernel: tpu_custom_call.1
$region0: #{tpu_custom_call.1}
  #allocation0 [shape = 'u32[]', space=smem, size = 0x4, offset = 0x4, fixed_abs, tag = 'smem constant byte address 0x4 - core index']
  #allocation1 [shape = 'u32[72,128]{1,0:T(1,128)}', space=vmem, size = 0x9000, scoped, tag = 'internal scratch']
  %s0 = inlined_call_operand.hbm [shape: f32[3,16,128], index: 0, kind: input, shape index: {}]
  %s1 = inlined_call_operand.hbm [shape: bf16[3,128,128], index: 1, kind: input, shape index: {}]
  %s2 = inlined_call_operand.hbm [shape: f32[3,1,128], index: 2, kind: input, shape index: {}]
  %s3 = inlined_call_operand.hbm [shape: f32[3,1,128], index: 3, kind: input, shape index: {}]
  %s4 = inlined_call_operand.vmem [shape: f32[1,128], index: 4, kind: input, shape index: {}]
  %s5 = inlined_call_operand.vmem [shape: f32[1,128], index: 5, kind: input, shape index: {}]
  %s6 = inlined_call_operand.hbm [shape: f32[16,128], index: 6, kind: output, shape index: {0}]
  %s7 = inlined_call_operand.vmem [shape: f32[16,3], index: 7, kind: output, shape index: {1}]
  %8 = xla_tuple %s6, %s7
  %s9 = sld [smem:[#allocation0]]
  $region58: #{tpu_custom_call.1} parent=0
    _
  %s11 = ssub.s32 1, %s9
  %s12 = scalar_select 0, %s11, %s9
  $region1: #{tpu_custom_call.1} parent=0
    #allocation2 [shape = 'u8[24576]{0}', space=vmem, size = 0x6000, scoped, tag = 'input window, operand 0, single buffered']
    #allocation3 [shape = 's32[1]{0}', space=sflag, size = 0x4, scoped, tag = 'scoped memory for tpu_custom_call.1']
    #allocation4 [shape = 's32[1]{0}', space=sflag, size = 0x4, scoped, tag = 'scoped memory for tpu_custom_call.1']
    #allocation5 [shape = 'u8[98304]{0}', space=vmem, size = 0x18000, scoped, tag = 'input window, operand 1, single buffered']
    #allocation6 [shape = 's32[1]{0}', space=sflag, size = 0x4, scoped, tag = 'scoped memory for tpu_custom_call.1']
    #allocation7 [shape = 'u8[1536]{0}', space=vmem, size = 0x800, scoped, tag = 'input window, operand 2, single buffered']
    #allocation8 [shape = 'u8[1536]{0}', space=vmem, size = 0x800, scoped, tag = 'input window, operand 3, single buffered']
    #allocation9 [shape = 's32[1]{0}', space=sflag, size = 0x4, scoped, tag = 'scoped memory for tpu_custom_call.1']
    #allocation10 [shape = 'u8[8192]{0}', space=vmem, size = 0x2000, scoped, tag = 'output window, operand 0, single buffered']
    %13 = vsyncpa [#allocation3], 0
    %14 = vsyncpa [#allocation6], 0
    %15 = vsyncpa [#allocation9], 0
    %16 = vsyncpa [#allocation4], 0
    // Predicated region
    $region2: #{tpu_custom_call.1} parent=1 // pred_check
      _
    $region3: #{tpu_custom_call.1} parent=1 // pred_check_branch
      %18 = sbr.rel (0) target = $region5
    $region4: #{tpu_custom_call.1} parent=1 // pred_region
      %20 = vsyncadd [#allocation3], 0
      %s21 = sshll.u32 %s0, 4
      %s22 = int_to_ptr.hbm [resolvable:$true] %s21
      %s23 = sshll.u32 [#allocation2], 4
      %s24 = int_to_ptr.vmem [resolvable:$true] %s23
      %29 = dma.hbm_to_vmem [thread:$0]  %s22, 768, %s24, [#allocation3], 128, 128, 8
    $region5: #{tpu_custom_call.1} parent=1 // pred_fallthru
      _
    // Predicated region
    $region6: #{tpu_custom_call.1} parent=1 // pred_check
      _
    $region7: #{tpu_custom_call.1} parent=1 // pred_check_branch
      %31 = sbr.rel (0) target = $region9
    $region8: #{tpu_custom_call.1} parent=1 // pred_region
      %33 = vsyncadd [#allocation6], 0
      %s34 = sshll.u32 %s1, 4
      %s35 = int_to_ptr.hbm [resolvable:$true] %s34
      %s36 = sshll.u32 [#allocation5], 4
      %s37 = int_to_ptr.vmem [resolvable:$true] %s36
      %42 = dma.hbm_to_vmem [thread:$0]  %s35, 3072, %s37, [#allocation6], 64, 64, 4
    $region9: #{tpu_custom_call.1} parent=1 // pred_fallthru
      _
    // Predicated region
    $region10: #{tpu_custom_call.1} parent=1 // pred_check
      _
    $region11: #{tpu_custom_call.1} parent=1 // pred_check_branch
      %44 = sbr.rel (0) target = $region13
    $region12: #{tpu_custom_call.1} parent=1 // pred_region
      %46 = vsyncadd [#allocation6], 0
      %s47 = sshll.u32 %s2, 4
      %s48 = int_to_ptr.hbm [resolvable:$true] %s47
      %s49 = sshll.u32 [#allocation7], 4
      %s50 = int_to_ptr.vmem [resolvable:$true] %s49
      %55 = dma.hbm_to_vmem [thread:$0]  %s48, 48, %s50, [#allocation6], 16, 16, 1
    $region13: #{tpu_custom_call.1} parent=1 // pred_fallthru
      _
    // Predicated region
    $region14: #{tpu_custom_call.1} parent=1 // pred_check
      _
    $region15: #{tpu_custom_call.1} parent=1 // pred_check_branch
      %57 = sbr.rel (0) target = $region17
    $region16: #{tpu_custom_call.1} parent=1 // pred_region
      %59 = vsyncadd [#allocation9], 0
      %s60 = sshll.u32 %s3, 4
      %s61 = int_to_ptr.hbm [resolvable:$true] %s60
      %s62 = sshll.u32 [#allocation8], 4
      %s63 = int_to_ptr.vmem [resolvable:$true] %s62
      %68 = dma.hbm_to_vmem [thread:$0]  %s61, 48, %s63, [#allocation9], 16, 16, 1
    $region17: #{tpu_custom_call.1} parent=1 // pred_fallthru
      _
    // Predicated region
    $region18: #{tpu_custom_call.1} parent=1 // pred_check
      _
    $region19: #{tpu_custom_call.1} parent=1 // pred_check_branch
      %70 = sbr.rel (0) target = $region21
    $region20: #{tpu_custom_call.1} parent=1 // pred_region
      _
    $region21: #{tpu_custom_call.1} parent=1 // pred_fallthru
      _
    // Predicated region
    $region22: #{tpu_custom_call.1} parent=1 // pred_check
      _
    $region23: #{tpu_custom_call.1} parent=1 // pred_check_branch
      %72 = sbr.rel (0) target = $region25
    $region24: #{tpu_custom_call.1} parent=1 // pred_region
      _
    $region25: #{tpu_custom_call.1} parent=1 // pred_fallthru
      _
    // Predicated region
    $region26: #{tpu_custom_call.1} parent=1 // pred_check
      _
    $region27: #{tpu_custom_call.1} parent=1 // pred_check_branch
      %74 = sbr.rel (0) target = $region29
    $region28: #{tpu_custom_call.1} parent=1 // pred_region
      %76 = dma.done [#allocation3], 768
    $region29: #{tpu_custom_call.1} parent=1 // pred_fallthru
      _
    // Predicated region
    $region30: #{tpu_custom_call.1} parent=1 // pred_check
      _
    $region31: #{tpu_custom_call.1} parent=1 // pred_check_branch
      %78 = sbr.rel (0) target = $region33
    $region32: #{tpu_custom_call.1} parent=1 // pred_region
      %80 = dma.done [#allocation6], 3072
    $region33: #{tpu_custom_call.1} parent=1 // pred_fallthru
      _
    // Predicated region
    $region34: #{tpu_custom_call.1} parent=1 // pred_check
      _
    $region35: #{tpu_custom_call.1} parent=1 // pred_check_branch
      %82 = sbr.rel (0) target = $region37
    $region36: #{tpu_custom_call.1} parent=1 // pred_region
      %84 = dma.done [#allocation6], 48
    $region37: #{tpu_custom_call.1} parent=1 // pred_fallthru
      _
    // Predicated region
    $region38: #{tpu_custom_call.1} parent=1 // pred_check
      _
    $region39: #{tpu_custom_call.1} parent=1 // pred_check_branch
      %86 = sbr.rel (0) target = $region41
    $region40: #{tpu_custom_call.1} parent=1 // pred_region
      %88 = dma.done [#allocation9], 48
    $region41: #{tpu_custom_call.1} parent=1 // pred_fallthru
      _
    %v89 = vlaneseq
    %v90 = vand.u32 %v89, 127
    %v91 = vld [vmem:[#allocation2] sm:$0xff]
    %v92 = vld [vmem:[#allocation2 + $0x8] sm:$0xff]
    %v93 = vpack.c.bf16 %v92, %v91
    %v94 = vld [vmem:[#allocation5] sm:$0xf]
    %v95 = vld [vmem:[#allocation5 + $0x4] sm:$0xf]
    %v96 = vld [vmem:[#allocation5 + $0x8] sm:$0xf]
    %v97 = vld [vmem:[#allocation5 + $0xc] sm:$0xf]
    %v98 = vld [vmem:[#allocation5 + $0x10] sm:$0xf]
    %v99 = vld [vmem:[#allocation5 + $0x14] sm:$0xf]
    %v100 = vld [vmem:[#allocation5 + $0x18] sm:$0xf]
    %v101 = vld [vmem:[#allocation5 + $0x1c] sm:$0xf]
    %v102 = vld [vmem:[#allocation5 + $0x20] sm:$0xf]
    %v103 = vld [vmem:[#allocation5 + $0x24] sm:$0xf]
    %v104 = vld [vmem:[#allocation5 + $0x28] sm:$0xf]
    %v105 = vld [vmem:[#allocation5 + $0x2c] sm:$0xf]
    %v106 = vld [vmem:[#allocation5 + $0x30] sm:$0xf]
    %v107 = vld [vmem:[#allocation5 + $0x34] sm:$0xf]
    %v108 = vld [vmem:[#allocation5 + $0x38] sm:$0xf]
    %v109 = vld [vmem:[#allocation5 + $0x3c] sm:$0xf]
    %v110 = vld [vmem:[#allocation7] sm:$0x1]
    %v112 = vperm.slane %v110, 0
    %v130 = vunpack.c.l.b16 %v94
    %v131 = vunpack.c.l.b16 %v95
    %v132 = vunpack.c.l.b16 %v96
    %v133 = vunpack.c.l.b16 %v97
    %v134 = vunpack.c.l.b16 %v98
    %v135 = vunpack.c.l.b16 %v99
    %v136 = vunpack.c.l.b16 %v100
    %v137 = vunpack.c.l.b16 %v101
    %v138 = vunpack.c.l.b16 %v102
    %v139 = vunpack.c.l.b16 %v103
    %v140 = vunpack.c.l.b16 %v104
    %v141 = vunpack.c.l.b16 %v105
    %v142 = vunpack.c.l.b16 %v106
    %v143 = vunpack.c.l.b16 %v107
    %v144 = vunpack.c.l.b16 %v108
    %v145 = vunpack.c.l.b16 %v109
    %v146 = vpack.c.b16 %v131, %v130
    %v147 = vpack.c.b16 %v133, %v132
    %v148 = vpack.c.b16 %v135, %v134
    %v149 = vpack.c.b16 %v137, %v136
    %v150 = vpack.c.b16 %v139, %v138
    %v151 = vpack.c.b16 %v141, %v140
    %v152 = vpack.c.b16 %v143, %v142
    %v153 = vpack.c.b16 %v145, %v144
    %162 = vmatpush.bf16.msra.mxu0 %v153
    %163 = vmatpush.bf16.msra.mxu0 %v152
    %164 = vmatpush.bf16.msra.mxu0 %v151
    %165 = vmatpush.bf16.msra.mxu0 %v150
    %166 = vmatpush.bf16.msra.mxu0 %v149
    %167 = vmatpush.bf16.msra.mxu0 %v148
    %168 = vmatpush.bf16.msra.mxu0 %v147
    %169 = vmatpush.bf16.msra.mxu0 %v146
    %170 = vmatmul.bf16.gmra.mxu0 %v93
    %v171 = vpop.f32.mrf.mxu0
    %v172 = vadd.f32 %v112, %v171
    %v173 = vpop.f32.mrf.mxu0
    %v174 = vadd.f32 %v112, %v173
    %175 = vdwg.mxu0
    %v176 = vmax.f32 %v172, 0.0
    %v177 = vmax.f32 %v174, 0.0
    %v178 = vld [vmem:[#allocation8] sm:$0x1]
    %v180 = vperm.slane %v178, 0
    %v182 = vmul.f32 %v176, %v180
    %v183 = vmul.f32 %v177, %v180
    %184 = vadd.xlane.f32.xlu0 %v182
    %v185 = vpop.xlane.xlu0 %184
    %186 = vadd.xlane.f32.xlu0 %v183
    %v187 = vpop.xlane.xlu0 %186
    %vm188 = vcmp.eq.s32.totalorder %v90, 0
    %v189 = vsel %vm188, %v185, -1e+30
    %v190 = vsel %vm188, %v187, -1e+30
    %s191 = scalar_lea.vmem [#allocation2], 16
    %v192 = vld [vmem:[%s191] sm:$0xff]
    %v193 = vld [vmem:[%s191 + $0x8] sm:$0xff]
    %v194 = vpack.c.bf16 %v193, %v192
    %s195 = scalar_lea.vmem [#allocation5], 64
    %v196 = vld [vmem:[%s195] sm:$0xf]
    %v197 = vld [vmem:[%s195 + $0x4] sm:$0xf]
    %v198 = vld [vmem:[%s195 + $0x8] sm:$0xf]
    %v199 = vld [vmem:[%s195 + $0xc] sm:$0xf]
    %v200 = vld [vmem:[%s195 + $0x10] sm:$0xf]
    %v201 = vld [vmem:[%s195 + $0x14] sm:$0xf]
    %v202 = vld [vmem:[%s195 + $0x18] sm:$0xf]
    %v203 = vld [vmem:[%s195 + $0x1c] sm:$0xf]
    %v204 = vld [vmem:[%s195 + $0x20] sm:$0xf]
    %v205 = vld [vmem:[%s195 + $0x24] sm:$0xf]
    %v206 = vld [vmem:[%s195 + $0x28] sm:$0xf]
    %v207 = vld [vmem:[%s195 + $0x2c] sm:$0xf]
    %v208 = vld [vmem:[%s195 + $0x30] sm:$0xf]
    %v209 = vld [vmem:[%s195 + $0x34] sm:$0xf]
    %v210 = vld [vmem:[%s195 + $0x38] sm:$0xf]
    %v211 = vld [vmem:[%s195 + $0x3c] sm:$0xf]
    %s212 = scalar_lea.vmem [#allocation7], 1
    %v213 = vld [vmem:[%s212] sm:$0x1]
    %v215 = vperm.slane %v213, 0
    %v233 = vunpack.c.l.b16 %v196
    %v234 = vunpack.c.l.b16 %v197
    %v235 = vunpack.c.l.b16 %v198
    %v236 = vunpack.c.l.b16 %v199
    %v237 = vunpack.c.l.b16 %v200
    %v238 = vunpack.c.l.b16 %v201
    %v239 = vunpack.c.l.b16 %v202
    %v240 = vunpack.c.l.b16 %v203
    %v241 = vunpack.c.l.b16 %v204
    %v242 = vunpack.c.l.b16 %v205
    %v243 = vunpack.c.l.b16 %v206
    %v244 = vunpack.c.l.b16 %v207
    %v245 = vunpack.c.l.b16 %v208
    %v246 = vunpack.c.l.b16 %v209
    %v247 = vunpack.c.l.b16 %v210
    %v248 = vunpack.c.l.b16 %v211
    %v249 = vpack.c.b16 %v234, %v233
    %v250 = vpack.c.b16 %v236, %v235
    %v251 = vpack.c.b16 %v238, %v237
    %v252 = vpack.c.b16 %v240, %v239
    %v253 = vpack.c.b16 %v242, %v241
    %v254 = vpack.c.b16 %v244, %v243
    %v255 = vpack.c.b16 %v246, %v245
    %v256 = vpack.c.b16 %v248, %v247
    %265 = vmatpush.bf16.msra.mxu0 %v256
    %266 = vmatpush.bf16.msra.mxu0 %v255
    %267 = vmatpush.bf16.msra.mxu0 %v254
    %268 = vmatpush.bf16.msra.mxu0 %v253
    %269 = vmatpush.bf16.msra.mxu0 %v252
    %270 = vmatpush.bf16.msra.mxu0 %v251
    %271 = vmatpush.bf16.msra.mxu0 %v250
    %272 = vmatpush.bf16.msra.mxu0 %v249
    %273 = vmatmul.bf16.gmra.mxu0 %v194
    %v274 = vpop.f32.mrf.mxu0
    %v275 = vadd.f32 %v215, %v274
    %v276 = vpop.f32.mrf.mxu0
    %v277 = vadd.f32 %v215, %v276
    %278 = vdwg.mxu0
    %v279 = vmax.f32 %v275, 0.0
    %v280 = vmax.f32 %v277, 0.0
    %s281 = scalar_lea.vmem [#allocation8], 1
    %v282 = vld [vmem:[%s281] sm:$0x1]
    %v284 = vperm.slane %v282, 0
    %v286 = vmul.f32 %v279, %v284
    %v287 = vmul.f32 %v280, %v284
    %288 = vadd.xlane.f32.xlu0 %v286
    %v289 = vpop.xlane.xlu0 %288
    %290 = vadd.xlane.f32.xlu0 %v287
    %v291 = vpop.xlane.xlu0 %290
    %vm292 = vcmp.eq.s32.totalorder %v90, 1
    %v293 = vsel %vm292, %v289, %v189
    %v294 = vsel %vm292, %v291, %v190
    %s295 = scalar_lea.vmem [#allocation2], 32
    %v296 = vld [vmem:[%s295] sm:$0xff]
    %v297 = vld [vmem:[%s295 + $0x8] sm:$0xff]
    %v298 = vpack.c.bf16 %v297, %v296
    %s299 = scalar_lea.vmem [#allocation5], 128
    %v300 = vld [vmem:[%s299] sm:$0xf]
    %v301 = vld [vmem:[%s299 + $0x4] sm:$0xf]
    %v302 = vld [vmem:[%s299 + $0x8] sm:$0xf]
    %v303 = vld [vmem:[%s299 + $0xc] sm:$0xf]
    %v304 = vld [vmem:[%s299 + $0x10] sm:$0xf]
    %v305 = vld [vmem:[%s299 + $0x14] sm:$0xf]
    %v306 = vld [vmem:[%s299 + $0x18] sm:$0xf]
    %v307 = vld [vmem:[%s299 + $0x1c] sm:$0xf]
    %v308 = vld [vmem:[%s299 + $0x20] sm:$0xf]
    %v309 = vld [vmem:[%s299 + $0x24] sm:$0xf]
    %v310 = vld [vmem:[%s299 + $0x28] sm:$0xf]
    %v311 = vld [vmem:[%s299 + $0x2c] sm:$0xf]
    %v312 = vld [vmem:[%s299 + $0x30] sm:$0xf]
    %v313 = vld [vmem:[%s299 + $0x34] sm:$0xf]
    %v314 = vld [vmem:[%s299 + $0x38] sm:$0xf]
    %v315 = vld [vmem:[%s299 + $0x3c] sm:$0xf]
    %s316 = scalar_lea.vmem [#allocation7], 2
    %v317 = vld [vmem:[%s316] sm:$0x1]
    %v319 = vperm.slane %v317, 0
    %v337 = vunpack.c.l.b16 %v300
    %v338 = vunpack.c.l.b16 %v301
    %v339 = vunpack.c.l.b16 %v302
    %v340 = vunpack.c.l.b16 %v303
    %v341 = vunpack.c.l.b16 %v304
    %v342 = vunpack.c.l.b16 %v305
    %v343 = vunpack.c.l.b16 %v306
    %v344 = vunpack.c.l.b16 %v307
    %v345 = vunpack.c.l.b16 %v308
    %v346 = vunpack.c.l.b16 %v309
    %v347 = vunpack.c.l.b16 %v310
    %v348 = vunpack.c.l.b16 %v311
    %v349 = vunpack.c.l.b16 %v312
    %v350 = vunpack.c.l.b16 %v313
    %v351 = vunpack.c.l.b16 %v314
    %v352 = vunpack.c.l.b16 %v315
    %v353 = vpack.c.b16 %v338, %v337
    %v354 = vpack.c.b16 %v340, %v339
    %v355 = vpack.c.b16 %v342, %v341
    %v356 = vpack.c.b16 %v344, %v343
    %v357 = vpack.c.b16 %v346, %v345
    %v358 = vpack.c.b16 %v348, %v347
    %v359 = vpack.c.b16 %v350, %v349
    %v360 = vpack.c.b16 %v352, %v351
    %369 = vmatpush.bf16.msra.mxu0 %v360
    %370 = vmatpush.bf16.msra.mxu0 %v359
    %371 = vmatpush.bf16.msra.mxu0 %v358
    %372 = vmatpush.bf16.msra.mxu0 %v357
    %373 = vmatpush.bf16.msra.mxu0 %v356
    %374 = vmatpush.bf16.msra.mxu0 %v355
    %375 = vmatpush.bf16.msra.mxu0 %v354
    %376 = vmatpush.bf16.msra.mxu0 %v353
    %377 = vmatmul.bf16.gmra.mxu0 %v298
    %v378 = vpop.f32.mrf.mxu0
    %v379 = vadd.f32 %v319, %v378
    %v380 = vpop.f32.mrf.mxu0
    %v381 = vadd.f32 %v319, %v380
    %382 = vdwg.mxu0
    %v383 = vmax.f32 %v379, 0.0
    %v384 = vmax.f32 %v381, 0.0
    %s385 = scalar_lea.vmem [#allocation8], 2
    %v386 = vld [vmem:[%s385] sm:$0x1]
    %v388 = vperm.slane %v386, 0
    %v390 = vmul.f32 %v383, %v388
    %v391 = vmul.f32 %v384, %v388
    %392 = vadd.xlane.f32.xlu0 %v390
    %v393 = vpop.xlane.xlu0 %392
    %394 = vadd.xlane.f32.xlu0 %v391
    %v395 = vpop.xlane.xlu0 %394
    %vm396 = vcmp.eq.s32.totalorder %v90, 2
    %v397 = vsel %vm396, %v393, %v293
    %v398 = vsel %vm396, %v395, %v294
    %v399 = vld [vmem:[%s4] sm:$0x1]
    %v401 = vperm.slane %v399, 0
    %v403 = vadd.f32 %v397, %v401
    %v404 = vadd.f32 %v398, %v401
    %405 = vmax.xlane.f32.xlu0 %v403
    %v406 = vpop.xlane.xlu0 %405
    %407 = vmax.xlane.f32.xlu0 %v404
    %v408 = vpop.xlane.xlu0 %407
    %v409 = vsub.f32 %v403, %v406
    %v410 = vsub.f32 %v404, %v408
    %v411 = vmul.f32 %v409, 1.442695
    %v412 = vpow.pop %v411
    %v413 = vmul.f32 %v410, 1.442695
    %v414 = vpow.pop %v413
    %v415 = vld [vmem:[%s5] sm:$0x1]
    %v417 = vperm.slane %v415, 0
    %v419 = vmul.f32 %v412, %v417
    %v420 = vmul.f32 %v414, %v417
    %421 = vadd.xlane.f32.xlu0 %v419
    %v422 = vpop.xlane.xlu0 %421
    %423 = vadd.xlane.f32.xlu0 %v420
    %v424 = vpop.xlane.xlu0 %423
    %v425 = vrcp.pop %v422
    %v426 = vrcp.pop %v424
    %v427 = vmul.f32 %v422, %v425
    %v428 = vmul.f32 %v424, %v426
    %v429 = vsub.f32 2.0, %v427
    %v430 = vsub.f32 2.0, %v428
    %v431 = vmul.f32 %v425, %v429
    %v432 = vmul.f32 %v426, %v430
    %v433 = vmul.f32 %v419, %v431
    %v434 = vmul.f32 %v420, %v432
    %vm435 = vcmask 23552
    %436 = vst.msk [vmem:[%s7] sm:$0xff] %vm435, %v433
    %437 = vst.msk [vmem:[%s7 + $0x8] sm:$0xff] %vm435, %v434
    %v438 = vld [vmem:[#allocation2] sm:$0xff]
    %v439 = vld [vmem:[#allocation2 + $0x8] sm:$0xff]
    %441 = vset.pattern.permute.xlu0 0
    %442 = vperm.xlu0 %441, %v433
    %v443 = vpop.permute.xlu0 %442
    %446 = vset.pattern.permute.xlu0 0
    %447 = vperm.xlu0 %446, %v434
    %v448 = vpop.permute.xlu0 %447
    %v450 = vmul.f32 %v443, %v438
    %v451 = vmul.f32 %v448, %v439
    %v452 = vld [vmem:[%s191] sm:$0xff]
    %v453 = vld [vmem:[%s191 + $0x8] sm:$0xff]
    %454 = vset.pattern.permute.xlu0 1
    %455 = vperm.xlu0 %454, %v433
    %v456 = vpop.permute.xlu0 %455
    %458 = vset.pattern.permute.xlu0 1
    %459 = vperm.xlu0 %458, %v434
    %v460 = vpop.permute.xlu0 %459
    %v462 = vmul.f32 %v456, %v452
    %v463 = vmul.f32 %v460, %v453
    %v464 = vadd.f32 %v450, %v462
    %v465 = vadd.f32 %v451, %v463
    %v466 = vld [vmem:[%s295] sm:$0xff]
    %v467 = vld [vmem:[%s295 + $0x8] sm:$0xff]
    %468 = vset.pattern.permute.xlu0 2
    %469 = vperm.xlu0 %468, %v433
    %v470 = vpop.permute.xlu0 %469
    %472 = vset.pattern.permute.xlu0 2
    %473 = vperm.xlu0 %472, %v434
    %v474 = vpop.permute.xlu0 %473
    %v476 = vmul.f32 %v470, %v466
    %v477 = vmul.f32 %v474, %v467
    %v478 = vadd.f32 %v464, %v476
    %v479 = vadd.f32 %v465, %v477
    %480 = vst [vmem:[#allocation10] sm:$0xff] %v478
    %481 = vst [vmem:[#allocation10 + $0x8] sm:$0xff] %v479
    // Predicated region
    $region42: #{tpu_custom_call.1} parent=1 // pred_check
      _
    $region43: #{tpu_custom_call.1} parent=1 // pred_check_branch
      %483 = sbr.rel (0) target = $region45
    $region44: #{tpu_custom_call.1} parent=1 // pred_region
      %485 = vsyncadd [#allocation4], 0
      %s486 = sshll.u32 [#allocation10], 4
      %s487 = int_to_ptr.vmem [resolvable:$true] %s486
      %s488 = sshll.u32 %s6, 4
      %s489 = int_to_ptr.hbm [resolvable:$true] %s488
      %494 = dma.vmem_to_hbm [thread:$0]  %s487, 256, %s489, [#allocation4], 128, 128, 8
    $region45: #{tpu_custom_call.1} parent=1 // pred_fallthru
      _
    // Predicated region
    $region46: #{tpu_custom_call.1} parent=1 // pred_check
      _
    $region47: #{tpu_custom_call.1} parent=1 // pred_check_branch
      %496 = sbr.rel (0) target = $region49
    $region48: #{tpu_custom_call.1} parent=1 // pred_region
      _
    $region49: #{tpu_custom_call.1} parent=1 // pred_fallthru
      _
    // Predicated region
    $region50: #{tpu_custom_call.1} parent=1 // pred_check
      _
    $region51: #{tpu_custom_call.1} parent=1 // pred_check_branch
      %498 = sbr.rel (0) target = $region53
    $region52: #{tpu_custom_call.1} parent=1 // pred_region
      %500 = dma.done [#allocation4], 256
    $region53: #{tpu_custom_call.1} parent=1 // pred_fallthru
      _
    // Predicated region
    $region54: #{tpu_custom_call.1} parent=1 // pred_check
      _
    $region55: #{tpu_custom_call.1} parent=1 // pred_check_branch
      %502 = sbr.rel (0) target = $region57
    $region56: #{tpu_custom_call.1} parent=1 // pred_region
      _
    $region57: #{tpu_custom_call.1} parent=1 // pred_fallthru
      _
    %503 = vsyncpa [#allocation3], 1
    %504 = vsyncpa [#allocation6], 1
    %505 = vsyncpa [#allocation9], 1
    %506 = vsyncpa [#allocation4], 1

</llo_original>
